<compile_context>
chip_gen: v7x
topology: tpu7x:2x2x1
jax: 0.10.0
libtpu: 0.0.40
codegen_flags: <defaults>
</compile_context>

<pallas_src>
import functools

import numpy as np
import jax
import jax.numpy as jnp
from jax.experimental import pallas as pl
from jax.experimental.pallas import tpu as pltpu

_LANES = 128
_SUBLANES = 8


def _round_up(x, m):
    return ((x + m - 1) // m) * m


def _pick_tile_m(m_rounded, c_pad):
    # Budget ~20 MiB for ~10 live f32 (row, C_pad) slabs per tile
    # (double-buffered sim tile + xa/d/hinge/mask temporaries).  Keeps the
    # working set comfortably inside v7x's 64 MiB physical VMEM (32 MiB scoped
    # default) while still allowing TM up to 512 when C is small.
    budget = 20 * 1024 * 1024
    per_row = 10 * 4 * c_pad
    tm = (budget // per_row) // _SUBLANES * _SUBLANES
    tm = max(_SUBLANES, min(512, tm))
    return min(tm, m_rounded)


# ------------------------------- Pallas kernel -------------------------------

def joint_loss_kernel(x_ref, at_ref, a2_ref, lab_ref, sim_ref, o_ref, *,
                      margin, sim_margin):
    # x   : (TM, dim)   f32  source rows, then target rows, then zero pad rows
    # at  : (dim, Cp)   f32  agents^T, zero-padded classes; resident across tiles
    # a2  : (1, Cp)     f32  ||agent_j||^2, precomputed once in the wrapper
    # lab : (TM, 1)     i32  label per row; -1 for target / pad rows
    # sim : (TM, Cp)    f32  similarity; pad entries strictly below sim_margin
    # o   : (8, 128)    f32  per-tile partials: [0,0]=pos_sum [0,1]=neg_sum [0,2]=n_neg
    x = x_ref[...]
    at = at_ref[...]
    a2 = a2_ref[...]
    lab = lab_ref[...]
    sim = sim_ref[...]

    tm, cp = sim.shape

    # Squared distances to every agent: one MXU matmul + rank-1 norm terms.
    xa = jnp.dot(x, at, preferred_element_type=jnp.float32)        # (TM, Cp)
    x2 = jnp.sum(x * x, axis=1, keepdims=True)                     # (TM, 1)
    d = jnp.maximum(x2 + a2 - 2.0 * xa, 0.0)                       # (TM, Cp)

    col = jax.lax.broadcasted_iota(jnp.int32, (tm, cp), 1)
    onehot = col == lab                                            # computed once
    pos_sum = jnp.sum(jnp.where(onehot, d, 0.0), keepdims=True)    # (1, 1)

    # Hard negatives: sim > sim_margin, excluding the own-label column.
    # Target/pad rows have label -1 so nothing is excluded; pad sim entries are
    # below sim_margin so pad rows/columns never count.
    hard = jnp.logical_and(sim > sim_margin, jnp.logical_not(onehot))
    hard_f = hard.astype(jnp.float32)                              # cast once, reused
    hinge = jnp.maximum(margin - d, 0.0)                           # (TM, Cp)
    cnt = jnp.sum(hard_f, axis=1, keepdims=True)                   # (TM, 1)
    neg_row = jnp.sum(hard_f * hinge, axis=1, keepdims=True)       # (TM, 1)
    has_hard = cnt > 0.0
    neg_terms = jnp.where(has_hard, neg_row / jnp.maximum(cnt, 1.0), 0.0)
    neg_sum = jnp.sum(neg_terms, keepdims=True)                    # (1, 1)
    n_neg = jnp.sum(jnp.where(has_hard, 1.0, 0.0), keepdims=True)  # (1, 1)

    # Lane-dense (8, 128) output tile with the three partials in lanes 0..2.
    sub = jax.lax.broadcasted_iota(jnp.int32, (_SUBLANES, _LANES), 0)
    lane = jax.lax.broadcasted_iota(jnp.int32, (_SUBLANES, _LANES), 1)
    first = sub == 0
    o_ref[...] = (jnp.where(first & (lane == 0), pos_sum, 0.0)
                  + jnp.where(first & (lane == 1), neg_sum, 0.0)
                  + jnp.where(first & (lane == 2), n_neg, 0.0))


# --------------------------------- wrapper ------------------------------------

@functools.partial(jax.jit, static_argnames=("margin",))
def joint_loss(features, agents, labels, similarity,
               features_target, similarity_target, margin=1.0):
    margin = float(margin)
    sim_margin = 1.0 - margin / 2.0
    sim_pad_val = sim_margin - 1.0     # strictly fails the `sim > sim_margin` test

    B, dim = features.shape
    C = agents.shape[0]
    Bt = features_target.shape[0]
    M = B + Bt

    c_pad = _round_up(C, _LANES)
    tm = _pick_tile_m(_round_up(M, _SUBLANES), c_pad)
    n_tiles = pl.cdiv(M, tm)
    m_pad = n_tiles * tm

    f32 = jnp.float32
    # Layout plumbing: one padded slab per input (concat + pad + cast fuse into a
    # single XLA materialization pass).
    # TODO(synk): accept pre-padded / pre-concatenated inputs to drop this copy.
    x = jnp.concatenate([features.astype(f32), features_target.astype(f32)], 0)
    x = jnp.pad(x, ((0, m_pad - M), (0, 0)))
    sim = jnp.concatenate([similarity.astype(f32),
                           similarity_target.astype(f32)], 0)
    sim = jnp.pad(sim, ((0, m_pad - M), (0, c_pad - C)),
                  constant_values=sim_pad_val)
    lab = jnp.concatenate([labels.astype(jnp.int32),
                           jnp.full((Bt,), -1, jnp.int32)])
    lab = jnp.pad(lab, (0, m_pad - M), constant_values=-1).reshape(m_pad, 1)

    a = agents.astype(f32)
    a_t = jnp.pad(jnp.transpose(a), ((0, 0), (0, c_pad - C)))       # (dim, Cp)
    a2 = jnp.pad(jnp.sum(a * a, axis=1), (0, c_pad - C)).reshape(1, c_pad)

    kernel = functools.partial(joint_loss_kernel,
                               margin=margin, sim_margin=sim_margin)

    flops = 2 * m_pad * dim * c_pad + 12 * m_pad * c_pad
    bytes_accessed = 4 * (m_pad * dim + m_pad * c_pad + m_pad
                          + dim * c_pad + c_pad
                          + n_tiles * _SUBLANES * _LANES)

    partials = pl.pallas_call(
        kernel,
        out_shape=jax.ShapeDtypeStruct((n_tiles * _SUBLANES, _LANES), jnp.float32),
        grid=(n_tiles,),
        in_specs=[
            pl.BlockSpec((tm, dim), lambda i: (i, 0)),
            pl.BlockSpec((dim, c_pad), lambda i: (0, 0)),   # resident agents
            pl.BlockSpec((1, c_pad), lambda i: (0, 0)),     # resident agent norms
            pl.BlockSpec((tm, 1), lambda i: (i, 0)),
            pl.BlockSpec((tm, c_pad), lambda i: (i, 0)),
        ],
        out_specs=pl.BlockSpec((_SUBLANES, _LANES), lambda i: (i, 0)),
        compiler_params=pltpu.CompilerParams(
            dimension_semantics=("parallel",),               # v7x: both TCs
            vmem_limit_bytes=32 * 1024 * 1024),
        cost_estimate=pl.CostEstimate(
            flops=flops, transcendentals=0, bytes_accessed=bytes_accessed),
    )(x, a_t, a2, lab, sim)

    # Tiny final reduction over per-tile partials (lanes 0..2 used).
    totals = jnp.sum(partials, axis=0)                       # (128,)
    pos_sum, neg_sum, n_neg = totals[0], totals[1], totals[2]
    # B positive terms always exist, plus one negative term per row that had
    # any hard negatives -> exactly PyTorch's mean over the loss_terms list.
    return (pos_sum + neg_sum) / (jnp.float32(B) + n_neg)


# -------------------------- numpy reference (PyTorch loops) -------------------

def reference_joint_loss(features, agents, labels, similarity,
                         features_target, similarity_target, margin=1.0):
    sim_margin = 1.0 - margin / 2.0
    n_class = agents.shape[0]
    arange = np.arange(n_class)
    terms = []
    for f, l, s in zip(features, labels, similarity):
        terms.append(((f - agents[l]) ** 2).sum())
        neg_idx = arange != l
        hard = neg_idx & (s > sim_margin)
        if hard.any():
            sd = ((f[None, :] - agents[hard]) ** 2).sum(axis=1)
            terms.append(np.maximum(0.0, margin - sd).mean())
    for f, s in zip(features_target, similarity_target):
        hard = s > sim_margin
        if hard.any():
            sd = ((f[None, :] - agents[hard]) ** 2).sum(axis=1)
            terms.append(np.maximum(0.0, margin - sd).mean())
    return float(np.mean(np.array(terms)))


# ------------------------------------ main -------------------------------------

if __name__ == "__main__":
    B, Bt, dim, n_class = 4, 4, 32, 8

    key = jax.random.PRNGKey(0)
    kf, ka, kl, ks, kft, kst = jax.random.split(key, 6)

    # Small feature scale so squared distances land around the margin and the
    # hinge terms are actually exercised.
    features = 0.1 * jax.random.normal(kf, (B, dim), jnp.float32)
    agents = 0.1 * jax.random.normal(ka, (n_class, dim), jnp.float32)
    labels = jax.random.randint(kl, (B,), 0, n_class)
    similarity = jax.random.uniform(ks, (B, n_class), jnp.float32, -1.0, 1.0)
    features_target = 0.1 * jax.random.normal(kft, (Bt, dim), jnp.float32)
    similarity_target = jax.random.uniform(kst, (Bt, n_class),
                                           jnp.float32, -1.0, 1.0)

    loss = joint_loss(features, agents, labels, similarity,
                      features_target, similarity_target, margin=1.0)
    loss = jax.block_until_ready(loss)

    ref = reference_joint_loss(
        np.asarray(features, dtype=np.float64),
        np.asarray(agents, dtype=np.float64),
        np.asarray(labels),
        np.asarray(similarity, dtype=np.float64),
        np.asarray(features_target, dtype=np.float64),
        np.asarray(similarity_target, dtype=np.float64),
        margin=1.0)

    out_val = float(loss)
    assert np.isfinite(out_val)
    assert abs(out_val - ref) < 1e-4 * max(1.0, abs(ref)), \
        f"pallas={out_val:.6f} ref={ref:.6f}"
    print("KERNEL_OK")
</pallas_src>

<mosaic_0001>
module attributes {stable_mosaic.version = 11 : i64} {
  func.func @joint_loss_kernel(%arg0: i32, %arg1: memref<8x32xf32, #tpu.memory_space<vmem>>, %arg2: memref<32x128xf32, #tpu.memory_space<vmem>>, %arg3: memref<1x128xf32, #tpu.memory_space<vmem>>, %arg4: memref<8x1xi32, #tpu.memory_space<vmem>>, %arg5: memref<8x128xf32, #tpu.memory_space<vmem>>, %arg6: memref<8x128xf32, #tpu.memory_space<vmem>>) attributes {dimension_semantics = [#tpu.dimension_semantics<parallel>], iteration_bounds = array<i64: 1>, scalar_prefetch = 0 : i64, scratch_operands = 0 : i64, tpu.core_type = #tpu.core_type<tc>, window_params = [{transform_indices = @transform_0, window_bounds = array<i64: 8, 32>}, {pipeline_mode = #tpu.pipeline_mode<synchronous>, transform_indices = @transform_1, window_bounds = array<i64: 32, 128>}, {pipeline_mode = #tpu.pipeline_mode<synchronous>, transform_indices = @transform_2, window_bounds = array<i64: 1, 128>}, {transform_indices = @transform_3, window_bounds = array<i64: 8, 1>}, {transform_indices = @transform_4, window_bounds = array<i64: 8, 128>}, {transform_indices = @transform_5, window_bounds = array<i64: 8, 128>}]} {
    %c0 = arith.constant 0 : index
    %c0_0 = arith.constant 0 : index
    %0 = vector.load %arg1[%c0, %c0_0] : memref<8x32xf32, #tpu.memory_space<vmem>>, vector<8x32xf32>
    %c0_1 = arith.constant 0 : index
    %c0_2 = arith.constant 0 : index
    %1 = vector.load %arg2[%c0_1, %c0_2] : memref<32x128xf32, #tpu.memory_space<vmem>>, vector<32x128xf32>
    %c0_3 = arith.constant 0 : index
    %c0_4 = arith.constant 0 : index
    %2 = vector.load %arg3[%c0_3, %c0_4] : memref<1x128xf32, #tpu.memory_space<vmem>>, vector<1x128xf32>
    %c0_5 = arith.constant 0 : index
    %c0_6 = arith.constant 0 : index
    %3 = vector.load %arg4[%c0_5, %c0_6] : memref<8x1xi32, #tpu.memory_space<vmem>>, vector<8x1xi32>
    %c0_7 = arith.constant 0 : index
    %c0_8 = arith.constant 0 : index
    %4 = vector.load %arg5[%c0_7, %c0_8] : memref<8x128xf32, #tpu.memory_space<vmem>>, vector<8x128xf32>
    %cst = arith.constant dense<0.000000e+00> : vector<8x128xf32>
    %5 = tpu.matmul %0, %1, %cst {dimension_numbers = #tpu.dot_dimension_numbers<[1], [0], [0], [1], [0, 0, 1, 1], [], []>} : vector<8x32xf32>, vector<32x128xf32>, vector<8x128xf32> -> vector<8x128xf32>
    %6 = arith.mulf %0, %0 : vector<8x32xf32>
    %cst_9 = arith.constant dense<0.000000e+00> : vector<8xf32>
    %7 = vector.multi_reduction <add>, %6, %cst_9 [1] : vector<8x32xf32> to vector<8xf32>
    %8 = vector.shape_cast %7 : vector<8xf32> to vector<8x1xf32>
    %9 = vector.broadcast %8 : vector<8x1xf32> to vector<8x128xf32>
    %10 = vector.broadcast %2 : vector<1x128xf32> to vector<8x128xf32>
    %11 = arith.addf %9, %10 : vector<8x128xf32>
    %cst_10 = arith.constant 2.000000e+00 : f32
    %12 = vector.broadcast %cst_10 : f32 to vector<8x128xf32>
    %13 = arith.mulf %12, %5 : vector<8x128xf32>
    %14 = arith.subf %11, %13 : vector<8x128xf32>
    %cst_11 = arith.constant 0.000000e+00 : f32
    %15 = vector.broadcast %cst_11 : f32 to vector<8x128xf32>
    %16 = arith.maximumf %14, %15 : vector<8x128xf32>
    %17 = tpu.iota {dimensions = array<i32: 1>} : vector<8x128xi32>
    %18 = vector.broadcast %3 : vector<8x1xi32> to vector<8x128xi32>
    %19 = arith.cmpi eq, %17, %18 : vector<8x128xi32>
    %cst_12 = arith.constant 0.000000e+00 : f32
    %20 = vector.broadcast %cst_12 : f32 to vector<8x128xf32>
    %21 = arith.select %19, %16, %20 : vector<8x128xi1>, vector<8x128xf32>
    %22 = vector.shape_cast %21 : vector<8x128xf32> to vector<1x8x128xf32>
    %cst_13 = arith.constant dense<0.000000e+00> : vector<1xf32>
    %23 = vector.multi_reduction <add>, %22, %cst_13 [1, 2] : vector<1x8x128xf32> to vector<1xf32>
    %24 = vector.shape_cast %23 : vector<1xf32> to vector<1x1x1xf32>
    %25 = vector.extract %24[0, 0, 0] : f32 from vector<1x1x1xf32>
    %26 = vector.broadcast %25 : f32 to vector<1x1xf32>
    %cst_14 = arith.constant 5.000000e-01 : f32
    %27 = vector.broadcast %cst_14 : f32 to vector<8x128xf32>
    %28 = arith.cmpf ogt, %4, %27 : vector<8x128xf32>
    %cst_15 = arith.constant dense<true> : vector<8x128xi1>
    %29 = arith.xori %19, %cst_15 : vector<8x128xi1>
    %30 = arith.andi %28, %29 : vector<8x128xi1>
    %31 = arith.extui %30 : vector<8x128xi1> to vector<8x128xi32>
    %32 = arith.sitofp %31 : vector<8x128xi32> to vector<8x128xf32>
    %cst_16 = arith.constant 1.000000e+00 : f32
    %33 = vector.broadcast %cst_16 : f32 to vector<8x128xf32>
    %34 = arith.subf %33, %16 : vector<8x128xf32>
    %cst_17 = arith.constant 0.000000e+00 : f32
    %35 = vector.broadcast %cst_17 : f32 to vector<8x128xf32>
    %36 = arith.maximumf %34, %35 : vector<8x128xf32>
    %cst_18 = arith.constant dense<0.000000e+00> : vector<8xf32>
    %37 = vector.multi_reduction <add>, %32, %cst_18 [1] : vector<8x128xf32> to vector<8xf32>
    %38 = vector.shape_cast %37 : vector<8xf32> to vector<8x1xf32>
    %39 = arith.mulf %32, %36 : vector<8x128xf32>
    %cst_19 = arith.constant dense<0.000000e+00> : vector<8xf32>
    %40 = vector.multi_reduction <add>, %39, %cst_19 [1] : vector<8x128xf32> to vector<8xf32>
    %41 = vector.shape_cast %40 : vector<8xf32> to vector<8x1xf32>
    %cst_20 = arith.constant 0.000000e+00 : f32
    %42 = vector.broadcast %cst_20 : f32 to vector<8x1xf32>
    %43 = arith.cmpf ogt, %38, %42 : vector<8x1xf32>
    %cst_21 = arith.constant 1.000000e+00 : f32
    %44 = vector.broadcast %cst_21 : f32 to vector<8x1xf32>
    %45 = arith.maximumf %38, %44 : vector<8x1xf32>
    %46 = arith.divf %41, %45 : vector<8x1xf32>
    %cst_22 = arith.constant 0.000000e+00 : f32
    %47 = vector.broadcast %cst_22 : f32 to vector<8x1xf32>
    %48 = arith.select %43, %46, %47 : vector<8x1xi1>, vector<8x1xf32>
    %49 = vector.shape_cast %48 : vector<8x1xf32> to vector<1x8x1xf32>
    %cst_23 = arith.constant dense<0.000000e+00> : vector<1xf32>
    %50 = vector.multi_reduction <add>, %49, %cst_23 [1, 2] : vector<1x8x1xf32> to vector<1xf32>
    %51 = vector.shape_cast %50 : vector<1xf32> to vector<1x1x1xf32>
    %52 = vector.extract %51[0, 0, 0] : f32 from vector<1x1x1xf32>
    %53 = vector.broadcast %52 : f32 to vector<1x1xf32>
    %cst_24 = arith.constant 1.000000e+00 : f32
    %cst_25 = arith.constant 0.000000e+00 : f32
    %54 = vector.broadcast %cst_24 : f32 to vector<8x1xf32>
    %55 = vector.broadcast %cst_25 : f32 to vector<8x1xf32>
    %56 = arith.select %43, %54, %55 : vector<8x1xi1>, vector<8x1xf32>
    %57 = vector.shape_cast %56 : vector<8x1xf32> to vector<1x8x1xf32>
    %cst_26 = arith.constant dense<0.000000e+00> : vector<1xf32>
    %58 = vector.multi_reduction <add>, %57, %cst_26 [1, 2] : vector<1x8x1xf32> to vector<1xf32>
    %59 = vector.shape_cast %58 : vector<1xf32> to vector<1x1x1xf32>
    %60 = vector.extract %59[0, 0, 0] : f32 from vector<1x1x1xf32>
    %61 = vector.broadcast %60 : f32 to vector<1x1xf32>
    %62 = tpu.iota {dimensions = array<i32: 0>} : vector<8x128xi32>
    %63 = tpu.iota {dimensions = array<i32: 1>} : vector<8x128xi32>
    %c0_i32 = arith.constant 0 : i32
    %64 = vector.broadcast %c0_i32 : i32 to vector<8x128xi32>
    %65 = arith.cmpi eq, %62, %64 : vector<8x128xi32>
    %c0_i32_27 = arith.constant 0 : i32
    %66 = vector.broadcast %c0_i32_27 : i32 to vector<8x128xi32>
    %67 = arith.cmpi eq, %63, %66 : vector<8x128xi32>
    %68 = arith.andi %65, %67 : vector<8x128xi1>
    %cst_28 = arith.constant 0.000000e+00 : f32
    %69 = vector.shape_cast %26 : vector<1x1xf32> to vector<1x1xf32>
    %70 = vector.broadcast %69 : vector<1x1xf32> to vector<8x128xf32>
    %71 = vector.broadcast %cst_28 : f32 to vector<8x128xf32>
    %72 = arith.select %68, %70, %71 : vector<8x128xi1>, vector<8x128xf32>
    %c1_i32 = arith.constant 1 : i32
    %73 = vector.broadcast %c1_i32 : i32 to vector<8x128xi32>
    %74 = arith.cmpi eq, %63, %73 : vector<8x128xi32>
    %75 = arith.andi %65, %74 : vector<8x128xi1>
    %cst_29 = arith.constant 0.000000e+00 : f32
    %76 = vector.shape_cast %53 : vector<1x1xf32> to vector<1x1xf32>
    %77 = vector.broadcast %76 : vector<1x1xf32> to vector<8x128xf32>
    %78 = vector.broadcast %cst_29 : f32 to vector<8x128xf32>
    %79 = arith.select %75, %77, %78 : vector<8x128xi1>, vector<8x128xf32>
    %80 = arith.addf %72, %79 : vector<8x128xf32>
    %c2_i32 = arith.constant 2 : i32
    %81 = vector.broadcast %c2_i32 : i32 to vector<8x128xi32>
    %82 = arith.cmpi eq, %63, %81 : vector<8x128xi32>
    %83 = arith.andi %65, %82 : vector<8x128xi1>
    %cst_30 = arith.constant 0.000000e+00 : f32
    %84 = vector.shape_cast %61 : vector<1x1xf32> to vector<1x1xf32>
    %85 = vector.broadcast %84 : vector<1x1xf32> to vector<8x128xf32>
    %86 = vector.broadcast %cst_30 : f32 to vector<8x128xf32>
    %87 = arith.select %83, %85, %86 : vector<8x128xi1>, vector<8x128xf32>
    %88 = arith.addf %80, %87 : vector<8x128xf32>
    %c0_31 = arith.constant 0 : index
    %c0_32 = arith.constant 0 : index
    %89 = vector.load %arg6[%c0_31, %c0_32] : memref<8x128xf32, #tpu.memory_space<vmem>>, vector<8x128xf32>
    tpu.vector_store %arg6[%c0_31, %c0_32], %88 {strides = array<i32>} : memref<8x128xf32, #tpu.memory_space<vmem>>, vector<8x128xf32>,
    return
  }
  func.func @transform_0(%arg0: i32) -> (i32, i32) {
    %c0_i32 = arith.constant 0 : i32
    %c0_i32_0 = arith.constant 0 : i32
    return %arg0, %c0_i32 : i32, i32
  }
  func.func @transform_1(%arg0: i32) -> (i32, i32) {
    %c0_i32 = arith.constant 0 : i32
    %c0_i32_0 = arith.constant 0 : i32
    %c0_i32_1 = arith.constant 0 : i32
    return %c0_i32, %c0_i32_0 : i32, i32
  }
  func.func @transform_2(%arg0: i32) -> (i32, i32) {
    %c0_i32 = arith.constant 0 : i32
    %c0_i32_0 = arith.constant 0 : i32
    %c0_i32_1 = arith.constant 0 : i32
    return %c0_i32, %c0_i32_0 : i32, i32
  }
  func.func @transform_3(%arg0: i32) -> (i32, i32) {
    %c0_i32 = arith.constant 0 : i32
    %c0_i32_0 = arith.constant 0 : i32
    return %arg0, %c0_i32 : i32, i32
  }
  func.func @transform_4(%arg0: i32) -> (i32, i32) {
    %c0_i32 = arith.constant 0 : i32
    %c0_i32_0 = arith.constant 0 : i32
    return %arg0, %c0_i32 : i32, i32
  }
  func.func @transform_5(%arg0: i32) -> (i32, i32) {
    %c0_i32 = arith.constant 0 : i32
    %c0_i32_0 = arith.constant 0 : i32
    return %arg0, %c0_i32 : i32, i32
  }
}

</mosaic_0001>

<llo_original>
// kernel: joint_loss.1
$region0: #{joint_loss.1}
  #allocation0 [shape = 'u32[]', space=smem, size = 0x4, offset = 0x4, fixed_abs, tag = 'smem constant byte address 0x4 - core index']
  #allocation1 [shape = 'u32[144,128]{1,0:T(1,128)}', space=vmem, size = 0x12000, scoped, tag = 'internal scratch']
  %s0 = inlined_call_operand.vmem [shape: f32[8,32], index: 0, kind: input, shape index: {}]
  %s1 = inlined_call_operand.vmem [shape: f32[32,128], index: 1, kind: input, shape index: {}]
  %s2 = inlined_call_operand.vmem [shape: f32[1,128], index: 2, kind: input, shape index: {}]
  %s3 = inlined_call_operand.vmem [shape: s32[8,1], index: 3, kind: input, shape index: {}]
  %s4 = inlined_call_operand.vmem [shape: f32[8,128], index: 4, kind: input, shape index: {}]
  %s5 = inlined_call_operand.vmem [shape: f32[8,128], index: 5, kind: output, shape index: {}]
  %s6 = sld [smem:[#allocation0]]
  $region30: #{joint_loss.1} parent=0
    _
  %s8 = ssub.s32 1, %s6
  %s9 = scalar_select 0, %s8, %s6
  // Predicated region
  $region2: #{joint_loss.1} parent=0 // pred_check
    _
  $region3: #{joint_loss.1} parent=0 // pred_check_branch
    %11 = sbr.rel (0) target = $region5
  $region4: #{joint_loss.1} parent=0 // pred_region
    _
  $region5: #{joint_loss.1} parent=0 // pred_fallthru
    _
  // Predicated region
  $region6: #{joint_loss.1} parent=0 // pred_check
    _
  $region7: #{joint_loss.1} parent=0 // pred_check_branch
    %13 = sbr.rel (0) target = $region9
  $region8: #{joint_loss.1} parent=0 // pred_region
    _
  $region9: #{joint_loss.1} parent=0 // pred_fallthru
    _
  // Predicated region
  $region10: #{joint_loss.1} parent=0 // pred_check
    _
  $region11: #{joint_loss.1} parent=0 // pred_check_branch
    %15 = sbr.rel (0) target = $region13
  $region12: #{joint_loss.1} parent=0 // pred_region
    _
  $region13: #{joint_loss.1} parent=0 // pred_fallthru
    _
  // Predicated region
  $region14: #{joint_loss.1} parent=0 // pred_check
    _
  $region15: #{joint_loss.1} parent=0 // pred_check_branch
    %17 = sbr.rel (0) target = $region17
  $region16: #{joint_loss.1} parent=0 // pred_region
    _
  $region17: #{joint_loss.1} parent=0 // pred_fallthru
    _
  // Predicated region
  $region18: #{joint_loss.1} parent=0 // pred_check
    _
  $region19: #{joint_loss.1} parent=0 // pred_check_branch
    %19 = sbr.rel (0) target = $region21
  $region20: #{joint_loss.1} parent=0 // pred_region
    _
  $region21: #{joint_loss.1} parent=0 // pred_fallthru
    _
  %v20 = vld [vmem:[%s0] sm:$0xff]
  %v21 = vld [vmem:[%s1] sm:$0xff]
  %v22 = vld [vmem:[%s1 + $0x8] sm:$0xff]
  %v23 = vld [vmem:[%s1 + $0x10] sm:$0xff]
  %v24 = vld [vmem:[%s1 + $0x18] sm:$0xff]
  %v25 = vld [vmem:[%s2] sm:$0x1]
  %v26 = vld [vmem:[%s3] sm:$0xff]
  %v27 = vld [vmem:[%s4] sm:$0xff]
  %vm28 = vcmask 261120
  %v30 = vsel %vm28, %v20, 0
  %32 = vmatprep.subr.mxu0 0.0
  %33 = vmatpush1.msra.mxu0 %v21
  %34 = vmatprep.subr.mxu0 0.0
  %35 = vmatpush1.msra.mxu0 %v22
  %36 = vmatprep.subr.mxu0 0.0
  %37 = vmatpush1.msra.mxu0 %v23
  %38 = vmatprep.subr.mxu0 0.0
  %39 = vmatpush1.msra.mxu0 %v24
  %40 = vmatprep.subr.mxu0 0.0
  %41 = vmatpush1.msra.mxu0 0.0
  %42 = vmatprep.subr.mxu0 0.0
  %43 = vmatpush1.msra.mxu0 0.0
  %44 = vmatprep.subr.mxu0 0.0
  %45 = vmatpush1.msra.mxu0 0.0
  %46 = vmatprep.subr.mxu0 0.0
  %47 = vmatpush1.msra.mxu0 0.0
  %48 = vmatprep.subr.mxu0 0.0
  %49 = vmatpush1.msra.mxu0 0.0
  %50 = vmatprep.subr.mxu0 0.0
  %51 = vmatpush1.msra.mxu0 0.0
  %52 = vmatprep.subr.mxu0 0.0
  %53 = vmatpush1.msra.mxu0 0.0
  %54 = vmatprep.subr.mxu0 0.0
  %55 = vmatpush1.msra.mxu0 0.0
  %56 = vmatprep.subr.mxu0 0.0
  %57 = vmatpush1.msra.mxu0 0.0
  %58 = vmatprep.subr.mxu0 0.0
  %59 = vmatpush1.msra.mxu0 0.0
  %60 = vmatprep.subr.mxu0 0.0
  %61 = vmatpush1.msra.mxu0 0.0
  %62 = vmatprep.subr.mxu0 0.0
  %63 = vmatpush1.msra.mxu0 0.0
  %64 = vmatprep.subr.mxu0 0.0
  %65 = vmatpush1.msra.mxu0 0.0
  %66 = vmatprep.subr.mxu0 0.0
  %67 = vmatpush1.msra.mxu0 0.0
  %68 = vmatprep.subr.mxu0 0.0
  %69 = vmatpush1.msra.mxu0 0.0
  %70 = vmatprep.subr.mxu0 0.0
  %71 = vmatpush1.msra.mxu0 0.0
  %72 = vmatprep.subr.mxu0 0.0
  %73 = vmatpush1.msra.mxu0 0.0
  %74 = vmatprep.subr.mxu0 0.0
  %75 = vmatpush1.msra.mxu0 0.0
  %76 = vmatprep.subr.mxu0 0.0
  %77 = vmatpush1.msra.mxu0 0.0
  %78 = vmatprep.subr.mxu0 0.0
  %79 = vmatpush1.msra.mxu0 0.0
  %80 = vmatprep.subr.mxu0 0.0
  %81 = vmatpush1.msra.mxu0 0.0
  %82 = vmatprep.subr.mxu0 0.0
  %83 = vmatpush1.msra.mxu0 0.0
  %84 = vmatprep.subr.mxu0 0.0
  %85 = vmatpush1.msra.mxu0 0.0
  %86 = vmatprep.subr.mxu0 0.0
  %87 = vmatpush1.msra.mxu0 0.0
  %88 = vmatprep.subr.mxu0 0.0
  %89 = vmatpush1.msra.mxu0 0.0
  %90 = vmatprep.subr.mxu0 0.0
  %91 = vmatpush1.msra.mxu0 0.0
  %92 = vmatprep.subr.mxu0 0.0
  %93 = vmatpush1.msra.mxu0 0.0
  %94 = vmatprep.subr.mxu0 0.0
  %95 = vmatpush1.msra.mxu0 0.0
  %96 = vmatprep.mubr.f32.mxu0 0.0
  %97 = vmatmul.mubr.f32.gmra.mrb[0].mxu0 %v30
  %v98 = vpop.f32.mrb[0].mxu0
  %v99 = vadd.f32 0.0, %v98
  %v100 = vpop.f32.mrb[0].mxu0
  %101 = vdwg.mxu0
  %v102 = vmul.f32 %v20, %v20
  %v103 = vsel %vm28, %v102, 0.0
  %104 = vadd.xlane.f32.xlu0 %v103
  %v105 = vpop.xlane.xlu0 %104
  %v107 = vlaneseq
  %v108 = vshrl.u32 %v107, 7
  %v109 = vsub.s32 0, %v108
  %v110 = vrot.slane %v25, %v109
  %v112 = vadd.f32 %v105, %v110
  %v113 = vmul.f32 %v99, 2.0
  %v114 = vsub.f32 %v112, %v113
  %v115 = vmax.f32 %v114, 0.0
  %v116 = vlaneseq
  %v117 = vand.u32 %v116, 127
  %118 = vset.pattern.permute.xlu0 0
  %119 = vperm.xlu0 %118, %v26
  %v120 = vpop.permute.xlu0 %119
  %vm121 = vcmp.eq.s32.totalorder %v117, %v120
  %v122 = vsel %vm121, %v115, 0.0
  %123 = vadd.xlane.f32.xlu0 %v122
  %v124 = vpop.xlane.xlu0 %123
  %v125 = vrot.slane %v124, 4
  %v126 = vadd.f32 %v124, %v125
  %v127 = vrot.slane %v126, 2
  %v128 = vadd.f32 %v126, %v127
  %v129 = vrot.slane %v128, 1
  %v130 = vadd.f32 %v128, %v129
  %s131 = vtos %v130
  %vm132 = vcmp.gt.f32.partialorder %v27, 0.5
  %vm133 = vmxor %vm121, 1
  %vm134 = vmand %vm132, %vm133
  %v135 = vsel %vm134, 1, 0
  %v136 = vcvt.s32.f32 %v135
  %v137 = vsub.f32 1.0, %v115
  %v138 = vmax.f32 %v137, 0.0
  %139 = vadd.xlane.f32.xlu0 %v136
  %v140 = vpop.xlane.xlu0 %139
  %v141 = vmul.f32 %v136, %v138
  %142 = vadd.xlane.f32.xlu0 %v141
  %v143 = vpop.xlane.xlu0 %142
  %vm144 = vcmp.gt.f32.partialorder %v140, 0.0
  %v145 = vmax.f32 %v140, 1.0
  %v146 = vrcp.pop %v145
  %v147 = vmul.f32 %v143, %v146
  %v148 = vsel %vm144, %v147, 0.0
  %vm149 = vcmask 7168
  %v150 = vsel %vm149, %v148, 0.0
  %151 = vadd.xlane.f32.xlu0 %v150
  %v152 = vpop.xlane.xlu0 %151
  %v153 = vrot.slane %v152, 4
  %v154 = vadd.f32 %v152, %v153
  %v155 = vrot.slane %v154, 2
  %v156 = vadd.f32 %v154, %v155
  %v157 = vrot.slane %v156, 1
  %v158 = vadd.f32 %v156, %v157
  %s159 = vtos %v158
  %v160 = vsel %vm144, 1.0, 0.0
  %v161 = vsel %vm149, %v160, 0.0
  %162 = vadd.xlane.f32.xlu0 %v161
  %v163 = vpop.xlane.xlu0 %162
  %v164 = vrot.slane %v163, 4
  %v165 = vadd.f32 %v163, %v164
  %v166 = vrot.slane %v165, 2
  %v167 = vadd.f32 %v165, %v166
  %v168 = vrot.slane %v167, 1
  %v169 = vadd.f32 %v167, %v168
  %s170 = vtos %v169
  %v171 = vlaneseq
  %v172 = vshrl.u32 %v171, 7
  %vm173 = vcmp.eq.s32.totalorder %v172, 0
  %vm174 = vcmp.eq.s32.totalorder %v117, 0
  %vm175 = vmand %vm173, %vm174
  %v176 = vstv %s131
  %v177 = vsel %vm175, %v176, 0.0
  %vm178 = vcmp.eq.s32.totalorder %v117, 1
  %vm179 = vmand %vm173, %vm178
  %v180 = vstv %s159
  %v181 = vsel %vm179, %v180, 0.0
  %v182 = vadd.f32 %v177, %v181
  %vm183 = vcmp.eq.s32.totalorder %v117, 2
  %vm184 = vmand %vm173, %vm183
  %v185 = vstv %s170
  %v186 = vsel %vm184, %v185, 0.0
  %v187 = vadd.f32 %v182, %v186
  %188 = vst [vmem:[%s5] sm:$0xff] %v187
  // Predicated region
  $region22: #{joint_loss.1} parent=0 // pred_check
    _
  $region23: #{joint_loss.1} parent=0 // pred_check_branch
    %190 = sbr.rel (0) target = $region25
  $region24: #{joint_loss.1} parent=0 // pred_region
    _
  $region25: #{joint_loss.1} parent=0 // pred_fallthru
    _
  // Predicated region
  $region26: #{joint_loss.1} parent=0 // pred_check
    _
  $region27: #{joint_loss.1} parent=0 // pred_check_branch
    %192 = sbr.rel (0) target = $region29
  $region28: #{joint_loss.1} parent=0 // pred_region
    _
  $region29: #{joint_loss.1} parent=0 // pred_fallthru
    _

</llo_original>
